<compile_context>
chip_gen: v7x
topology: tpu7x:2x2x1
jax: 0.10.0
libtpu: 0.0.40
codegen_flags: <defaults>
</compile_context>

<pallas_src>
import functools

import jax
import jax.numpy as jnp
from jax.experimental import pallas as pl
from jax.experimental.pallas import tpu as pltpu


def _shortcut_kernel(x_ref, s_ref, o_ref, *, c_in, pad, b_tile):
    # x_ref: (b_tile * c_in, H*W)       rows = (image, channel), lane-dense flattened spatial
    # s_ref: (H*W, Ho*Wo)               0/1 selection matrix (bf16) for the stride-2 subsample
    # o_ref: (b_tile, c_in + 2*pad, Ho*Wo)
    x = x_ref[...]                                   # native dtype, no f32 up-cast copy
    sel = s_ref[...].astype(x.dtype)                 # 0/1 -> exact in any float dtype

    # Stride-2 H/W subsample as a single matmul: each column of `sel` has exactly one 1.0,
    # so this is an exact gather executed on the MXU for the whole batch block at once.
    y = jnp.dot(x, sel, preferred_element_type=jnp.float32)   # (b_tile*c_in, Ho*Wo)
    y = y.astype(o_ref.dtype)

    # One full-block (unmasked) zero store covers the channel zero-padding ...
    o_ref[...] = jnp.zeros(o_ref.shape, o_ref.dtype)
    # ... then one slice store per image for the real channels (statically unrolled).
    for b in range(b_tile):                          # b_tile is a small static int
        o_ref[b, pad:pad + c_in, :] = y[b * c_in:(b + 1) * c_in, :]


def _pick_batch_tile(n, c, target_rows=512):
    """Largest batch tile that (a) divides N exactly, (b) keeps the 2-D input block's
    sublane dim (b*c) a multiple of 8 (or full), (c) prefers >=2 grid steps (v7x has two
    TensorCores), and (d) keeps the MXU M dim around `target_rows`."""
    cands = [b for b in range(1, n + 1)
             if n % b == 0 and ((b * c) % 8 == 0 or b == n)]
    two_step = [b for b in cands if n // b >= 2]
    pool = two_step or cands
    under = [b for b in pool if b * c <= target_rows]
    return max(under) if under else min(pool)


def lambda_layer(x_nchw, planes=None):
    """ResNet option-A shortcut lambda. Input/output are NCHW (PyTorch convention)."""
    N, C, H, W = x_nchw.shape
    if planes is None:
        planes = 2 * C
    pad = planes // 4
    h_out = (H + 1) // 2
    w_out = (W + 1) // 2
    c_out = C + 2 * pad
    hw_in = H * W
    hw_out = h_out * w_out

    b_tile = _pick_batch_tile(N, C)
    grid = (N // b_tile,)

    # 0/1 selection matrix (bf16 is exact for 0/1): column (ho*w_out + wo) selects flat
    # input index (2*ho*W + 2*wo).  Constant-folds under jit; DMA'd once per pallas_call.
    src = (2 * jnp.arange(h_out, dtype=jnp.int32)[:, None] * W
           + 2 * jnp.arange(w_out, dtype=jnp.int32)[None, :]).reshape(-1)      # (hw_out,)
    sel = (jnp.arange(hw_in, dtype=jnp.int32)[:, None] == src[None, :]
           ).astype(jnp.bfloat16)                                              # (hw_in, hw_out)

    # Free (contiguous) reshape: fold (N, C) into the matmul M dim, spatial stays lane-dense.
    x2d = x_nchw.reshape(N * C, hw_in)

    sel_spec = pl.BlockSpec((hw_in, hw_out), lambda i: (0, 0))
    if hw_in * hw_out * sel.dtype.itemsize > (1 << 20):
        # Large feature maps: don't double-buffer the (constant-index) selection matrix --
        # it dominates VMEM, which matters most on v7x's 64 MiB.
        sel_spec = pl.BlockSpec((hw_in, hw_out), lambda i: (0, 0),
                                pipeline_mode=pl.Buffered(1))

    kernel = functools.partial(_shortcut_kernel, c_in=C, pad=pad, b_tile=b_tile)

    out = pl.pallas_call(
        kernel,
        out_shape=jax.ShapeDtypeStruct((N, c_out, hw_out), x_nchw.dtype),
        grid=grid,
        in_specs=[
            pl.BlockSpec((b_tile * C, hw_in), lambda i: (i, 0)),
            sel_spec,
        ],
        out_specs=pl.BlockSpec((b_tile, c_out, hw_out), lambda i: (i, 0, 0)),
        compiler_params=pltpu.CompilerParams(
            dimension_semantics=("parallel",)),
    )(x2d, sel)

    # Free reshape back to NCHW spatial layout.
    return out.reshape(N, c_out, h_out, w_out)


def _reference(x_nchw, planes):
    pad = planes // 4
    return jnp.pad(x_nchw[:, :, ::2, ::2],
                   ((0, 0), (pad, pad), (0, 0), (0, 0)))


if __name__ == "__main__":
    key = jax.random.PRNGKey(0)
    x = jax.random.normal(key, (2, 4, 16, 16), dtype=jnp.float32)  # NCHW
    planes = 8  # typical option-A shortcut doubles channels: planes = 2 * C_in

    run = jax.jit(lambda a: lambda_layer(a, planes=planes))
    out = jax.block_until_ready(run(x))

    expected = _reference(x, planes)
    assert out.shape == expected.shape, (out.shape, expected.shape)
    assert jnp.allclose(out, expected), "mismatch vs. pure-JAX reference"
    print("KERNEL_OK")
</pallas_src>

<mosaic_0001>
module attributes {stable_mosaic.version = 11 : i64} {
  func.func @_shortcut_kernel(%arg0: i32, %arg1: memref<8x256xf32, #tpu.memory_space<vmem>>, %arg2: memref<256x64xbf16, #tpu.memory_space<vmem>>, %arg3: memref<2x8x64xf32, #tpu.memory_space<vmem>>) attributes {dimension_semantics = [#tpu.dimension_semantics<parallel>], iteration_bounds = array<i64: 1>, scalar_prefetch = 0 : i64, scratch_operands = 0 : i64, tpu.core_type = #tpu.core_type<tc>, window_params = [{transform_indices = @transform_0, window_bounds = array<i64: 8, 256>}, {pipeline_mode = #tpu.pipeline_mode<synchronous>, transform_indices = @transform_1, window_bounds = array<i64: 256, 64>}, {transform_indices = @transform_2, window_bounds = array<i64: 2, 8, 64>}]} {
    %c0 = arith.constant 0 : index
    %c0_0 = arith.constant 0 : index
    %0 = vector.load %arg1[%c0, %c0_0] : memref<8x256xf32, #tpu.memory_space<vmem>>, vector<8x256xf32>
    %c0_1 = arith.constant 0 : index
    %c0_2 = arith.constant 0 : index
    %1 = vector.load %arg2[%c0_1, %c0_2] : memref<256x64xbf16, #tpu.memory_space<vmem>>, vector<256x64xbf16>
    %2 = arith.extf %1 : vector<256x64xbf16> to vector<256x64xf32>
    %cst = arith.constant dense<0.000000e+00> : vector<8x64xf32>
    %3 = tpu.matmul %0, %2, %cst {dimension_numbers = #tpu.dot_dimension_numbers<[1], [0], [0], [1], [0, 0, 1, 1], [], []>} : vector<8x256xf32>, vector<256x64xf32>, vector<8x64xf32> -> vector<8x64xf32>
    %cst_3 = arith.constant 0.000000e+00 : f32
    %4 = vector.broadcast %cst_3 : f32 to vector<2x8x64xf32>
    %c0_4 = arith.constant 0 : index
    %c0_5 = arith.constant 0 : index
    %c0_6 = arith.constant 0 : index
    %5 = vector.load %arg3[%c0_4, %c0_5, %c0_6] : memref<2x8x64xf32, #tpu.memory_space<vmem>>, vector<2x8x64xf32>
    tpu.vector_store %arg3[%c0_4, %c0_5, %c0_6], %4 {strides = array<i32>} : memref<2x8x64xf32, #tpu.memory_space<vmem>>, vector<2x8x64xf32>,
    %6 = vector.extract_strided_slice %3 {offsets = [0, 0], sizes = [4, 64], strides = [1, 1]} : vector<8x64xf32> to vector<4x64xf32>
    %c0_7 = arith.constant 0 : index
    %c2 = arith.constant 2 : index
    %c0_8 = arith.constant 0 : index
    %7 = vector.load %arg3[%c0_7, %c2, %c0_8] : memref<2x8x64xf32, #tpu.memory_space<vmem>>, vector<1x4x64xf32>
    %8 = vector.shape_cast %7 : vector<1x4x64xf32> to vector<4x64xf32>
    %9 = vector.shape_cast %6 : vector<4x64xf32> to vector<1x4x64xf32>
    tpu.vector_store %arg3[%c0_7, %c2, %c0_8], %9 {strides = array<i32>} : memref<2x8x64xf32, #tpu.memory_space<vmem>>, vector<1x4x64xf32>,
    %10 = vector.extract_strided_slice %3 {offsets = [4, 0], sizes = [4, 64], strides = [1, 1]} : vector<8x64xf32> to vector<4x64xf32>
    %c1 = arith.constant 1 : index
    %c2_9 = arith.constant 2 : index
    %c0_10 = arith.constant 0 : index
    %11 = vector.load %arg3[%c1, %c2_9, %c0_10] : memref<2x8x64xf32, #tpu.memory_space<vmem>>, vector<1x4x64xf32>
    %12 = vector.shape_cast %11 : vector<1x4x64xf32> to vector<4x64xf32>
    %13 = vector.shape_cast %10 : vector<4x64xf32> to vector<1x4x64xf32>
    tpu.vector_store %arg3[%c1, %c2_9, %c0_10], %13 {strides = array<i32>} : memref<2x8x64xf32, #tpu.memory_space<vmem>>, vector<1x4x64xf32>,
    return
  }
  func.func @transform_0(%arg0: i32) -> (i32, i32) {
    %c0_i32 = arith.constant 0 : i32
    %c0_i32_0 = arith.constant 0 : i32
    return %arg0, %c0_i32 : i32, i32
  }
  func.func @transform_1(%arg0: i32) -> (i32, i32) {
    %c0_i32 = arith.constant 0 : i32
    %c0_i32_0 = arith.constant 0 : i32
    %c0_i32_1 = arith.constant 0 : i32
    return %c0_i32, %c0_i32_0 : i32, i32
  }
  func.func @transform_2(%arg0: i32) -> (i32, i32, i32) {
    %c0_i32 = arith.constant 0 : i32
    %c0_i32_0 = arith.constant 0 : i32
    %c0_i32_1 = arith.constant 0 : i32
    return %arg0, %c0_i32, %c0_i32_0 : i32, i32, i32
  }
}

</mosaic_0001>

<llo_original>
// kernel: _lambda_.1
$region0: #{_lambda_.1}
  #allocation0 [shape = 'u32[]', space=smem, size = 0x4, offset = 0x4, fixed_abs, tag = 'smem constant byte address 0x4 - core index']
  #allocation1 [shape = 'u32[144,128]{1,0:T(1,128)}', space=vmem, size = 0x12000, scoped, tag = 'internal scratch']
  %s0 = inlined_call_operand.vmem [shape: f32[8,256], index: 0, kind: input, shape index: {}]
  %s1 = inlined_call_operand.vmem [shape: bf16[256,64], index: 1, kind: input, shape index: {}]
  %s2 = inlined_call_operand.vmem [shape: f32[2,8,64], index: 2, kind: output, shape index: {}]
  %s3 = sld [smem:[#allocation0]]
  $region18: #{_lambda_.1} parent=0
    _
  %s5 = ssub.s32 1, %s3
  %s6 = scalar_select 0, %s5, %s3
  // Predicated region
  $region2: #{_lambda_.1} parent=0 // pred_check
    _
  $region3: #{_lambda_.1} parent=0 // pred_check_branch
    %8 = sbr.rel (0) target = $region5
  $region4: #{_lambda_.1} parent=0 // pred_region
    _
  $region5: #{_lambda_.1} parent=0 // pred_fallthru
    _
  // Predicated region
  $region6: #{_lambda_.1} parent=0 // pred_check
    _
  $region7: #{_lambda_.1} parent=0 // pred_check_branch
    %10 = sbr.rel (0) target = $region9
  $region8: #{_lambda_.1} parent=0 // pred_region
    _
  $region9: #{_lambda_.1} parent=0 // pred_fallthru
    _
  %v11 = vld [vmem:[%s0] sm:$0xff]
  %v12 = vld [vmem:[%s0 + $0x8] sm:$0xff]
  %v13 = vld [vmem:[%s1] sm:$0xf]
  %v14 = vld [vmem:[%s1 + $0x4] sm:$0xf]
  %v15 = vld [vmem:[%s1 + $0x8] sm:$0xf]
  %v16 = vld [vmem:[%s1 + $0xc] sm:$0xf]
  %v17 = vld [vmem:[%s1 + $0x10] sm:$0xf]
  %v18 = vld [vmem:[%s1 + $0x14] sm:$0xf]
  %v19 = vld [vmem:[%s1 + $0x18] sm:$0xf]
  %v20 = vld [vmem:[%s1 + $0x1c] sm:$0xf]
  %v21 = vld [vmem:[%s1 + $0x20] sm:$0xf]
  %v22 = vld [vmem:[%s1 + $0x24] sm:$0xf]
  %v23 = vld [vmem:[%s1 + $0x28] sm:$0xf]
  %v24 = vld [vmem:[%s1 + $0x2c] sm:$0xf]
  %v25 = vld [vmem:[%s1 + $0x30] sm:$0xf]
  %v26 = vld [vmem:[%s1 + $0x34] sm:$0xf]
  %v27 = vld [vmem:[%s1 + $0x38] sm:$0xf]
  %v28 = vld [vmem:[%s1 + $0x3c] sm:$0xf]
  %v29 = vld [vmem:[%s1 + $0x40] sm:$0xf]
  %v30 = vld [vmem:[%s1 + $0x44] sm:$0xf]
  %v31 = vld [vmem:[%s1 + $0x48] sm:$0xf]
  %v32 = vld [vmem:[%s1 + $0x4c] sm:$0xf]
  %v33 = vld [vmem:[%s1 + $0x50] sm:$0xf]
  %v34 = vld [vmem:[%s1 + $0x54] sm:$0xf]
  %v35 = vld [vmem:[%s1 + $0x58] sm:$0xf]
  %v36 = vld [vmem:[%s1 + $0x5c] sm:$0xf]
  %v37 = vld [vmem:[%s1 + $0x60] sm:$0xf]
  %v38 = vld [vmem:[%s1 + $0x64] sm:$0xf]
  %v39 = vld [vmem:[%s1 + $0x68] sm:$0xf]
  %v40 = vld [vmem:[%s1 + $0x6c] sm:$0xf]
  %v41 = vld [vmem:[%s1 + $0x70] sm:$0xf]
  %v42 = vld [vmem:[%s1 + $0x74] sm:$0xf]
  %v43 = vld [vmem:[%s1 + $0x78] sm:$0xf]
  %v44 = vld [vmem:[%s1 + $0x7c] sm:$0xf]
  %v45 = vunpack.c.l.bf16 %v13
  %v46 = vunpack.c.l.bf16 %v14
  %v47 = vunpack.c.l.bf16 %v15
  %v48 = vunpack.c.l.bf16 %v16
  %v49 = vunpack.c.l.bf16 %v17
  %v50 = vunpack.c.l.bf16 %v18
  %v51 = vunpack.c.l.bf16 %v19
  %v52 = vunpack.c.l.bf16 %v20
  %v53 = vunpack.c.l.bf16 %v21
  %v54 = vunpack.c.l.bf16 %v22
  %v55 = vunpack.c.l.bf16 %v23
  %v56 = vunpack.c.l.bf16 %v24
  %v57 = vunpack.c.l.bf16 %v25
  %v58 = vunpack.c.l.bf16 %v26
  %v59 = vunpack.c.l.bf16 %v27
  %v60 = vunpack.c.l.bf16 %v28
  %v61 = vunpack.c.l.bf16 %v29
  %v62 = vunpack.c.l.bf16 %v30
  %v63 = vunpack.c.l.bf16 %v31
  %v64 = vunpack.c.l.bf16 %v32
  %v65 = vunpack.c.l.bf16 %v33
  %v66 = vunpack.c.l.bf16 %v34
  %v67 = vunpack.c.l.bf16 %v35
  %v68 = vunpack.c.l.bf16 %v36
  %v69 = vunpack.c.l.bf16 %v37
  %v70 = vunpack.c.l.bf16 %v38
  %v71 = vunpack.c.l.bf16 %v39
  %v72 = vunpack.c.l.bf16 %v40
  %v73 = vunpack.c.l.bf16 %v41
  %v74 = vunpack.c.l.bf16 %v42
  %v75 = vunpack.c.l.bf16 %v43
  %v76 = vunpack.c.l.bf16 %v44
  %77 = vmatprep.subr.mxu0 0.0
  %78 = vmatpush1.msra.mxu0 %v45
  %79 = vmatprep.subr.mxu0 0.0
  %80 = vmatpush1.msra.mxu0 %v46
  %81 = vmatprep.subr.mxu0 0.0
  %82 = vmatpush1.msra.mxu0 %v47
  %83 = vmatprep.subr.mxu0 0.0
  %84 = vmatpush1.msra.mxu0 %v48
  %85 = vmatprep.subr.mxu0 0.0
  %86 = vmatpush1.msra.mxu0 %v49
  %87 = vmatprep.subr.mxu0 0.0
  %88 = vmatpush1.msra.mxu0 %v50
  %89 = vmatprep.subr.mxu0 0.0
  %90 = vmatpush1.msra.mxu0 %v51
  %91 = vmatprep.subr.mxu0 0.0
  %92 = vmatpush1.msra.mxu0 %v52
  %93 = vmatprep.subr.mxu0 0.0
  %94 = vmatpush1.msra.mxu0 %v53
  %95 = vmatprep.subr.mxu0 0.0
  %96 = vmatpush1.msra.mxu0 %v54
  %97 = vmatprep.subr.mxu0 0.0
  %98 = vmatpush1.msra.mxu0 %v55
  %99 = vmatprep.subr.mxu0 0.0
  %100 = vmatpush1.msra.mxu0 %v56
  %101 = vmatprep.subr.mxu0 0.0
  %102 = vmatpush1.msra.mxu0 %v57
  %103 = vmatprep.subr.mxu0 0.0
  %104 = vmatpush1.msra.mxu0 %v58
  %105 = vmatprep.subr.mxu0 0.0
  %106 = vmatpush1.msra.mxu0 %v59
  %107 = vmatprep.subr.mxu0 0.0
  %108 = vmatpush1.msra.mxu0 %v60
  %109 = vmatprep.subr.mxu0 0.0
  %110 = vmatpush1.msra.mxu0 %v61
  %111 = vmatprep.subr.mxu0 0.0
  %112 = vmatpush1.msra.mxu0 %v62
  %113 = vmatprep.subr.mxu0 0.0
  %114 = vmatpush1.msra.mxu0 %v63
  %115 = vmatprep.subr.mxu0 0.0
  %116 = vmatpush1.msra.mxu0 %v64
  %117 = vmatprep.subr.mxu0 0.0
  %118 = vmatpush1.msra.mxu0 %v65
  %119 = vmatprep.subr.mxu0 0.0
  %120 = vmatpush1.msra.mxu0 %v66
  %121 = vmatprep.subr.mxu0 0.0
  %122 = vmatpush1.msra.mxu0 %v67
  %123 = vmatprep.subr.mxu0 0.0
  %124 = vmatpush1.msra.mxu0 %v68
  %125 = vmatprep.subr.mxu0 0.0
  %126 = vmatpush1.msra.mxu0 %v69
  %127 = vmatprep.subr.mxu0 0.0
  %128 = vmatpush1.msra.mxu0 %v70
  %129 = vmatprep.subr.mxu0 0.0
  %130 = vmatpush1.msra.mxu0 %v71
  %131 = vmatprep.subr.mxu0 0.0
  %132 = vmatpush1.msra.mxu0 %v72
  %133 = vmatprep.subr.mxu0 0.0
  %134 = vmatpush1.msra.mxu0 %v73
  %135 = vmatprep.subr.mxu0 0.0
  %136 = vmatpush1.msra.mxu0 %v74
  %137 = vmatprep.subr.mxu0 0.0
  %138 = vmatpush1.msra.mxu0 %v75
  %139 = vmatprep.subr.mxu0 0.0
  %140 = vmatpush1.msra.mxu0 %v76
  %141 = vmatprep.mubr.f32.mxu0 %v12
  %142 = vmatmul.mubr.f32.gmra.mrb[0].mxu0 %v11
  %v143 = vpop.f32.mrb[0].mxu0
  %v144 = vadd.f32 0.0, %v143
  %v145 = vpop.f32.mrb[0].mxu0
  %146 = vdwg.mxu0
  %vm147 = vcmask 523264
  %148 = vst.msk [vmem:[%s2] sm:$0xff] %vm147, 0.0
  %149 = vst.msk [vmem:[%s2 + $0x8] sm:$0xff] %vm147, 0.0
  %vm150 = vcmask 519168
  %151 = vst.msk [vmem:[%s2 + $0x2] sm:$0xf] %vm150, %v144
  %s152 = scalar_lea.vmem %s2, 8
  %vm153 = vcmask 523268
  %154 = vst.msk [vmem:[%s152 - $0x2] sm:$0xf0] %vm153, %v144
  // Predicated region
  $region10: #{_lambda_.1} parent=0 // pred_check
    _
  $region11: #{_lambda_.1} parent=0 // pred_check_branch
    %156 = sbr.rel (0) target = $region13
  $region12: #{_lambda_.1} parent=0 // pred_region
    _
  $region13: #{_lambda_.1} parent=0 // pred_fallthru
    _
  // Predicated region
  $region14: #{_lambda_.1} parent=0 // pred_check
    _
  $region15: #{_lambda_.1} parent=0 // pred_check_branch
    %158 = sbr.rel (0) target = $region17
  $region16: #{_lambda_.1} parent=0 // pred_region
    _
  $region17: #{_lambda_.1} parent=0 // pred_fallthru
    _

</llo_original>
